<compile_context>
chip_gen: v6e
topology: v6e:2x2x1
jax: 0.10.0
libtpu: 0.0.40
codegen_flags: <defaults>
</compile_context>

<pallas_src>
import jax
import jax.numpy as jnp
from jax.experimental import pallas as pl
from jax.experimental.pallas import tpu as pltpu

BN_EPS = 1e-5
LEAKY_SLOPE = 0.2


def _leaky_relu(x):
    # max form: mul + max (2 VPU ops) instead of cmp + mul + select (3 ops).
    return jnp.maximum(x, LEAKY_SLOPE * x)


def _round_up(x, m):
    return ((x + m - 1) // m) * m


def _tile_caps():
    """Generation-aware (pixel-tile cap, vmem_limit_bytes)."""
    try:
        vmem_cap = int(pltpu.get_tpu_info().vmem_capacity_bytes)
    except Exception:  # unknown platform / interpret mode: be conservative
        vmem_cap = 64 << 20
    if vmem_cap >= (128 << 20):      # v5e / v6e: 128 MiB VMEM per TC
        return 32768, 64 << 20
    return 16384, 40 << 20           # v7x: 64 MiB VMEM per TC


def _hidden(x_bf16, w1_ref, b1_ref, w2_ref):
    """conv1 + bias + LeakyReLU + conv2 for one (C, TP) pixel tile."""
    h1 = jnp.dot(w1_ref[...], x_bf16, preferred_element_type=jnp.float32)
    h1 = _leaky_relu(h1 + b1_ref[...])                       # (ndf, TP) f32
    h2 = jnp.dot(w2_ref[...], h1.astype(jnp.bfloat16),
                 preferred_element_type=jnp.float32)          # (2*ndf, TP) f32
    return h2


def _stats_kernel(x_ref, w1_ref, b1_ref, w2_ref, sum_ref, sumsq_ref):
    """Pass 1: per-batch partial sum / sum-of-squares of h2 (unmasked;
    padded-pixel contributions are subtracted analytically in the wrapper)."""
    @pl.when(pl.program_id(1) == 0)
    def _():
        sum_ref[...] = jnp.zeros_like(sum_ref)
        sumsq_ref[...] = jnp.zeros_like(sumsq_ref)

    h2 = _hidden(x_ref[0], w1_ref, b1_ref, w2_ref)            # (2*ndf, TP)
    sum_ref[0] += jnp.sum(h2, axis=1, keepdims=True)          # XLU reduce
    sumsq_ref[0] += jnp.sum(h2 * h2, axis=1, keepdims=True)


def _apply_kernel(x_ref, w1_ref, b1_ref, w2s_ref, shift_ref, w3_ref, out_ref):
    """Pass 2: recompute h2 with BN-scaled w2, add BN shift, LeakyReLU, conv3."""
    h2s = _hidden(x_ref[0], w1_ref, b1_ref, w2s_ref)          # scale-folded h2
    h2n = _leaky_relu(h2s + shift_ref[...])
    out = jnp.dot(w3_ref[...], h2n.astype(jnp.bfloat16),
                  preferred_element_type=jnp.float32)          # (1, TP) lane-dense
    out_ref[0] = out.astype(out_ref.dtype)


def pixel_discriminator(x_nchw, params, *, tile_pixels=None):
    """x_nchw: (N, C, H, W) float32. Returns (N, 1, H, W) float32."""
    w1_t, b1, w2_t, gamma, beta, w3_t = params
    N, C, H, W = x_nchw.shape
    HW = H * W
    ndf = w1_t.shape[0]
    ndf2 = w2_t.shape[0]

    # Pixel tile: big (default 8192) so per-grid-step overhead is amortized,
    # multiple of 128 lanes, capped by generation VMEM and the pixel count.
    tp_cap, vmem_bytes = _tile_caps()
    target = 8192 if tile_pixels is None else max(int(tile_pixels), 128)
    tp = _round_up(min(target, tp_cap, _round_up(HW, 128)), 128)
    hw_pad = _round_up(HW, tp)
    n_tiles = hw_pad // tp
    n_pad = hw_pad - HW

    # NCHW -> (N, C, H*W) is a free reshape (no transpose); bf16 halves the
    # dominant HBM read.  Pad the pixel axis with zeros to a tile multiple.
    x3 = x_nchw.reshape(N, C, HW).astype(jnp.bfloat16)
    if n_pad:
        x3 = jnp.pad(x3, ((0, 0), (0, 0), (0, n_pad)))

    w1b = w1_t.astype(jnp.bfloat16)
    w2b = w2_t.astype(jnp.bfloat16)
    w3b = w3_t.astype(jnp.bfloat16)

    def full2d(a):
        return pl.BlockSpec(a.shape, lambda n, t: (0, 0))

    x_spec = pl.BlockSpec((1, C, tp), lambda n, t: (n, 0, t))

    flops_hidden = 2 * N * hw_pad * (ndf * C + ndf2 * ndf)
    x_bytes = N * C * hw_pad * 2

    # ---- Pass 1: per-batch partial BatchNorm statistics of h2 ---------------
    part_sum, part_sumsq = pl.pallas_call(
        _stats_kernel,
        out_shape=(jax.ShapeDtypeStruct((N, ndf2, 1), jnp.float32),
                   jax.ShapeDtypeStruct((N, ndf2, 1), jnp.float32)),
        grid=(N, n_tiles),
        in_specs=[x_spec, full2d(w1b), full2d(b1), full2d(w2b)],
        out_specs=(pl.BlockSpec((1, ndf2, 1), lambda n, t: (n, 0, 0)),
                   pl.BlockSpec((1, ndf2, 1), lambda n, t: (n, 0, 0))),
        compiler_params=pltpu.CompilerParams(
            dimension_semantics=("parallel", "arbitrary"),
            vmem_limit_bytes=vmem_bytes),
        cost_estimate=pl.CostEstimate(
            flops=flops_hidden + 4 * N * hw_pad * ndf2,
            transcendentals=0,
            bytes_accessed=x_bytes + 2 * N * ndf2 * 4),
    )(x3, w1b, b1, w2b)

    # Combine per-batch partials; subtract the analytically-known contribution
    # of the zero-padded pixels (x=0 => h1=leaky(b1) => h2_pad constant).
    ch_sum = jnp.sum(part_sum, axis=0)                      # (2*ndf, 1)
    ch_sumsq = jnp.sum(part_sumsq, axis=0)
    if n_pad:
        h1_pad = _leaky_relu(b1)                            # (ndf, 1) f32
        h2_pad = jnp.dot(w2b, h1_pad.astype(jnp.bfloat16),
                         preferred_element_type=jnp.float32)
        npad_total = jnp.float32(N * n_pad)
        ch_sum = ch_sum - npad_total * h2_pad
        ch_sumsq = ch_sumsq - npad_total * (h2_pad * h2_pad)

    # Fold BN (batch stats, biased variance, eps=1e-5, affine) into the
    # conv2 weights (scale) plus a per-channel shift (bias).
    count = jnp.float32(N * HW)
    mu = ch_sum / count
    var = jnp.maximum(ch_sumsq / count - mu * mu, 0.0)      # clamp cancellation
    inv_std = jax.lax.rsqrt(var + BN_EPS)
    scale = gamma * inv_std                                  # (2*ndf, 1) f32
    shift = beta - mu * scale                                # (2*ndf, 1) f32
    w2s = (w2_t * scale).astype(jnp.bfloat16)                # scale folded in

    # ---- Pass 2: normalize + LeakyReLU + conv3, fully parallel over tiles ---
    out = pl.pallas_call(
        _apply_kernel,
        out_shape=jax.ShapeDtypeStruct((N, 1, hw_pad), jnp.float32),
        grid=(N, n_tiles),
        in_specs=[x_spec, full2d(w1b), full2d(b1), full2d(w2s),
                  full2d(shift), full2d(w3b)],
        out_specs=pl.BlockSpec((1, 1, tp), lambda n, t: (n, 0, t)),
        compiler_params=pltpu.CompilerParams(
            dimension_semantics=("parallel", "parallel"),
            vmem_limit_bytes=vmem_bytes),
        cost_estimate=pl.CostEstimate(
            flops=flops_hidden + 2 * N * hw_pad * ndf2 + 3 * N * hw_pad * ndf2,
            transcendentals=0,
            bytes_accessed=x_bytes + N * hw_pad * 4),
    )(x3, w1b, b1, w2s, shift, w3b)

    # (N, 1, hw_pad) -> drop pixel padding -> (N, 1, H, W); free reshape.
    return out[:, :, :HW].reshape(N, 1, H, W)


def init_params(key, input_nc, ndf):
    """Synthetic parameters in the kernel's transposed layout.

    PyTorch Conv2d weight is (Cout, Cin, 1, 1); we store (Cout, Cin) so every
    1x1 conv is  W @ x  with x laid out as (Cin, pixels).
    """
    k1, k2, k3, k4 = jax.random.split(key, 4)
    s1 = 1.0 / jnp.sqrt(jnp.float32(input_nc))
    s2 = 1.0 / jnp.sqrt(jnp.float32(ndf))
    s3 = 1.0 / jnp.sqrt(jnp.float32(2 * ndf))
    w1_t = jax.random.normal(k1, (ndf, input_nc), jnp.float32) * s1
    b1 = jax.random.normal(k4, (ndf, 1), jnp.float32) * s1
    w2_t = jax.random.normal(k2, (2 * ndf, ndf), jnp.float32) * s2
    gamma = jnp.ones((2 * ndf, 1), jnp.float32)   # BatchNorm affine init
    beta = jnp.zeros((2 * ndf, 1), jnp.float32)
    w3_t = jax.random.normal(k3, (1, 2 * ndf), jnp.float32) * s3
    return (w1_t, b1, w2_t, gamma, beta, w3_t)


def reference_forward(x_nchw, params):
    """Pure-JAX reference using the same bf16-operand / f32-accumulate matmuls.

    (bf16 matmul operands diverge slightly from PyTorch's pure-f32 conv; the
    elementwise / BN math is kept in f32, matching the kernel.)
    """
    w1_t, b1, w2_t, gamma, beta, w3_t = params
    N, C, H, W = x_nchw.shape
    x = x_nchw.reshape(N, C, H * W)

    def mm(w, a):
        return jnp.einsum('oc,ncp->nop', w.astype(jnp.bfloat16),
                          a.astype(jnp.bfloat16),
                          preferred_element_type=jnp.float32)

    h1 = _leaky_relu(mm(w1_t, x) + b1[None])
    h2 = mm(w2_t, h1)
    mu = jnp.mean(h2, axis=(0, 2), keepdims=True)
    var = jnp.mean((h2 - mu) ** 2, axis=(0, 2), keepdims=True)
    h2n = _leaky_relu((h2 - mu) * jax.lax.rsqrt(var + BN_EPS) * gamma[None]
                      + beta[None])
    out = mm(w3_t, h2n)
    return out.reshape(N, 1, H, W)


if __name__ == "__main__":
    key = jax.random.PRNGKey(0)
    kx, kp = jax.random.split(key)

    # H*W = 320 (not a multiple of 128) so the demo exercises pixel-tile
    # padding and the analytic padded-pixel correction of the BN statistics.
    N, input_nc, H, W = 2, 4, 16, 20
    ndf = 8

    x = jax.random.normal(kx, (N, input_nc, H, W), jnp.float32)
    params = init_params(kp, input_nc, ndf)

    ref = jax.block_until_ready(reference_forward(x, params))

    # Default adaptive tile (single pixel tile for this small image).
    out = jax.block_until_ready(pixel_discriminator(x, params))
    assert out.shape == (N, 1, H, W)
    d1 = float(jnp.max(jnp.abs(out - ref)))
    assert jnp.allclose(out, ref, atol=1e-2, rtol=1e-2), (
        f"mismatch vs reference (default tile), max abs diff = {d1}")

    # Small tile: exercises multi-tile stats accumulation, per-batch partial
    # sums and the padding correction (320 -> 3 tiles of 128, 64 padded).
    out2 = jax.block_until_ready(pixel_discriminator(x, params, tile_pixels=128))
    d2 = float(jnp.max(jnp.abs(out2 - ref)))
    assert jnp.allclose(out2, ref, atol=1e-2, rtol=1e-2), (
        f"mismatch vs reference (128-pixel tile), max abs diff = {d2}")

    print("KERNEL_OK")
</pallas_src>

<mosaic_0001>
module attributes {stable_mosaic.version = 11 : i64} {
  func.func @_stats_kernel(%arg0: i32, %arg1: i32, %arg2: memref<1x4x384xbf16, #tpu.memory_space<vmem>>, %arg3: memref<8x4xbf16, #tpu.memory_space<vmem>>, %arg4: memref<8x1xf32, #tpu.memory_space<vmem>>, %arg5: memref<16x8xbf16, #tpu.memory_space<vmem>>, %arg6: memref<1x16x1xf32, #tpu.memory_space<vmem>>, %arg7: memref<1x16x1xf32, #tpu.memory_space<vmem>>) attributes {dimension_semantics = [#tpu.dimension_semantics<parallel>, #tpu.dimension_semantics<arbitrary>], iteration_bounds = array<i64: 2, 1>, scalar_prefetch = 0 : i64, scratch_operands = 0 : i64, tpu.core_type = #tpu.core_type<tc>, window_params = [{transform_indices = @transform_0, window_bounds = array<i64: 1, 4, 384>}, {pipeline_mode = #tpu.pipeline_mode<synchronous>, transform_indices = @transform_1, window_bounds = array<i64: 8, 4>}, {pipeline_mode = #tpu.pipeline_mode<synchronous>, transform_indices = @transform_2, window_bounds = array<i64: 8, 1>}, {pipeline_mode = #tpu.pipeline_mode<synchronous>, transform_indices = @transform_3, window_bounds = array<i64: 16, 8>}, {transform_indices = @transform_4, window_bounds = array<i64: 1, 16, 1>}, {transform_indices = @transform_5, window_bounds = array<i64: 1, 16, 1>}]} {
    %c0_i32 = arith.constant 0 : i32
    %0 = arith.cmpi eq, %arg1, %c0_i32 : i32
    %1 = arith.extui %0 : i1 to i32
    %c0_i32_0 = arith.constant 0 : i32
    %2 = arith.cmpi ne, %1, %c0_i32_0 : i32
    scf.if %2 {
      %cst_25 = arith.constant 0.000000e+00 : f32
      %33 = vector.broadcast %cst_25 : f32 to vector<1x16x1xf32>
      %c0_26 = arith.constant 0 : index
      %c0_27 = arith.constant 0 : index
      %c0_28 = arith.constant 0 : index
      %34 = vector.load %arg6[%c0_26, %c0_27, %c0_28] : memref<1x16x1xf32, #tpu.memory_space<vmem>>, vector<1x16x1xf32>
      tpu.vector_store %arg6[%c0_26, %c0_27, %c0_28], %33 {strides = array<i32>} : memref<1x16x1xf32, #tpu.memory_space<vmem>>, vector<1x16x1xf32>,
      %cst_29 = arith.constant 0.000000e+00 : f32
      %35 = vector.broadcast %cst_29 : f32 to vector<1x16x1xf32>
      %c0_30 = arith.constant 0 : index
      %c0_31 = arith.constant 0 : index
      %c0_32 = arith.constant 0 : index
      %36 = vector.load %arg7[%c0_30, %c0_31, %c0_32] : memref<1x16x1xf32, #tpu.memory_space<vmem>>, vector<1x16x1xf32>
      tpu.vector_store %arg7[%c0_30, %c0_31, %c0_32], %35 {strides = array<i32>} : memref<1x16x1xf32, #tpu.memory_space<vmem>>, vector<1x16x1xf32>,
    } else {
    }
    %c0 = arith.constant 0 : index
    %c0_1 = arith.constant 0 : index
    %c0_2 = arith.constant 0 : index
    %3 = vector.load %arg2[%c0, %c0_1, %c0_2] : memref<1x4x384xbf16, #tpu.memory_space<vmem>>, vector<1x4x384xbf16>
    %4 = vector.shape_cast %3 : vector<1x4x384xbf16> to vector<4x384xbf16>
    %c0_3 = arith.constant 0 : index
    %c0_4 = arith.constant 0 : index
    %5 = vector.load %arg3[%c0_3, %c0_4] : memref<8x4xbf16, #tpu.memory_space<vmem>>, vector<8x4xbf16>
    %cst = arith.constant dense<0.000000e+00> : vector<8x384xf32>
    %6 = tpu.matmul %5, %4, %cst {dimension_numbers = #tpu.dot_dimension_numbers<[1], [0], [0], [1], [0, 0, 1, 1], [], []>} : vector<8x4xbf16>, vector<4x384xbf16>, vector<8x384xf32> -> vector<8x384xf32>
    %c0_5 = arith.constant 0 : index
    %c0_6 = arith.constant 0 : index
    %7 = vector.load %arg4[%c0_5, %c0_6] : memref<8x1xf32, #tpu.memory_space<vmem>>, vector<8x1xf32>
    %8 = vector.broadcast %7 : vector<8x1xf32> to vector<8x384xf32>
    %9 = arith.addf %6, %8 : vector<8x384xf32>
    %cst_7 = arith.constant 2.000000e-01 : f32
    %10 = vector.broadcast %cst_7 : f32 to vector<8x384xf32>
    %11 = arith.mulf %10, %9 : vector<8x384xf32>
    %12 = arith.maximumf %9, %11 : vector<8x384xf32>
    %c0_8 = arith.constant 0 : index
    %c0_9 = arith.constant 0 : index
    %13 = vector.load %arg5[%c0_8, %c0_9] : memref<16x8xbf16, #tpu.memory_space<vmem>>, vector<16x8xbf16>
    %14 = arith.truncf %12 : vector<8x384xf32> to vector<8x384xbf16>
    %cst_10 = arith.constant dense<0.000000e+00> : vector<16x384xf32>
    %15 = tpu.matmul %13, %14, %cst_10 {dimension_numbers = #tpu.dot_dimension_numbers<[1], [0], [0], [1], [0, 0, 1, 1], [], []>} : vector<16x8xbf16>, vector<8x384xbf16>, vector<16x384xf32> -> vector<16x384xf32>
    %c0_11 = arith.constant 0 : index
    %c0_12 = arith.constant 0 : index
    %c0_13 = arith.constant 0 : index
    %16 = vector.load %arg6[%c0_11, %c0_12, %c0_13] : memref<1x16x1xf32, #tpu.memory_space<vmem>>, vector<1x16x1xf32>
    %17 = vector.shape_cast %16 : vector<1x16x1xf32> to vector<16x1xf32>
    %cst_14 = arith.constant dense<0.000000e+00> : vector<16xf32>
    %18 = vector.multi_reduction <add>, %15, %cst_14 [1] : vector<16x384xf32> to vector<16xf32>
    %19 = vector.shape_cast %18 : vector<16xf32> to vector<16x1xf32>
    %20 = arith.addf %17, %19 : vector<16x1xf32>
    %c0_15 = arith.constant 0 : index
    %c0_16 = arith.constant 0 : index
    %c0_17 = arith.constant 0 : index
    %21 = vector.load %arg6[%c0_15, %c0_16, %c0_17] : memref<1x16x1xf32, #tpu.memory_space<vmem>>, vector<1x16x1xf32>
    %22 = vector.shape_cast %21 : vector<1x16x1xf32> to vector<16x1xf32>
    %23 = vector.shape_cast %20 : vector<16x1xf32> to vector<1x16x1xf32>
    tpu.vector_store %arg6[%c0_15, %c0_16, %c0_17], %23 {strides = array<i32>} : memref<1x16x1xf32, #tpu.memory_space<vmem>>, vector<1x16x1xf32>,
    %c0_18 = arith.constant 0 : index
    %c0_19 = arith.constant 0 : index
    %c0_20 = arith.constant 0 : index
    %24 = vector.load %arg7[%c0_18, %c0_19, %c0_20] : memref<1x16x1xf32, #tpu.memory_space<vmem>>, vector<1x16x1xf32>
    %25 = vector.shape_cast %24 : vector<1x16x1xf32> to vector<16x1xf32>
    %26 = arith.mulf %15, %15 : vector<16x384xf32>
    %cst_21 = arith.constant dense<0.000000e+00> : vector<16xf32>
    %27 = vector.multi_reduction <add>, %26, %cst_21 [1] : vector<16x384xf32> to vector<16xf32>
    %28 = vector.shape_cast %27 : vector<16xf32> to vector<16x1xf32>
    %29 = arith.addf %25, %28 : vector<16x1xf32>
    %c0_22 = arith.constant 0 : index
    %c0_23 = arith.constant 0 : index
    %c0_24 = arith.constant 0 : index
    %30 = vector.load %arg7[%c0_22, %c0_23, %c0_24] : memref<1x16x1xf32, #tpu.memory_space<vmem>>, vector<1x16x1xf32>
    %31 = vector.shape_cast %30 : vector<1x16x1xf32> to vector<16x1xf32>
    %32 = vector.shape_cast %29 : vector<16x1xf32> to vector<1x16x1xf32>
    tpu.vector_store %arg7[%c0_22, %c0_23, %c0_24], %32 {strides = array<i32>} : memref<1x16x1xf32, #tpu.memory_space<vmem>>, vector<1x16x1xf32>,
    return
  }
  func.func @transform_0(%arg0: i32, %arg1: i32) -> (i32, i32, i32) {
    %c0_i32 = arith.constant 0 : i32
    %c0_i32_0 = arith.constant 0 : i32
    return %arg0, %c0_i32, %arg1 : i32, i32, i32
  }
  func.func @transform_1(%arg0: i32, %arg1: i32) -> (i32, i32) {
    %c0_i32 = arith.constant 0 : i32
    %c0_i32_0 = arith.constant 0 : i32
    %c0_i32_1 = arith.constant 0 : i32
    return %c0_i32, %c0_i32_0 : i32, i32
  }
  func.func @transform_2(%arg0: i32, %arg1: i32) -> (i32, i32) {
    %c0_i32 = arith.constant 0 : i32
    %c0_i32_0 = arith.constant 0 : i32
    %c0_i32_1 = arith.constant 0 : i32
    return %c0_i32, %c0_i32_0 : i32, i32
  }
  func.func @transform_3(%arg0: i32, %arg1: i32) -> (i32, i32) {
    %c0_i32 = arith.constant 0 : i32
    %c0_i32_0 = arith.constant 0 : i32
    %c0_i32_1 = arith.constant 0 : i32
    return %c0_i32, %c0_i32_0 : i32, i32
  }
  func.func @transform_4(%arg0: i32, %arg1: i32) -> (i32, i32, i32) {
    %c0_i32 = arith.constant 0 : i32
    %c0_i32_0 = arith.constant 0 : i32
    %c0_i32_1 = arith.constant 0 : i32
    return %arg0, %c0_i32, %c0_i32_0 : i32, i32, i32
  }
  func.func @transform_5(%arg0: i32, %arg1: i32) -> (i32, i32, i32) {
    %c0_i32 = arith.constant 0 : i32
    %c0_i32_0 = arith.constant 0 : i32
    %c0_i32_1 = arith.constant 0 : i32
    return %arg0, %c0_i32, %c0_i32_0 : i32, i32, i32
  }
}

</mosaic_0001>

<llo_original>
// kernel: tpu_custom_call.1
$region0: #{tpu_custom_call.1}
  #allocation0 [shape = 'u32[]', space=smem, size = 0x4, offset = 0x4, fixed_abs, tag = 'smem constant byte address 0x4 - core index']
  #allocation1 [shape = 'u32[144,128]{1,0:T(1,128)}', space=vmem, size = 0x12000, scoped, tag = 'internal scratch']
  %s0 = inlined_call_operand.vmem [shape: bf16[2,4,384], index: 0, kind: input, shape index: {}]
  %s1 = inlined_call_operand.vmem [shape: bf16[8,4], index: 1, kind: input, shape index: {}]
  %s2 = inlined_call_operand.vmem [shape: f32[8,1], index: 2, kind: input, shape index: {}]
  %s3 = inlined_call_operand.vmem [shape: bf16[16,8], index: 3, kind: input, shape index: {}]
  %s4 = inlined_call_operand.vmem [shape: f32[2,16,1], index: 4, kind: output, shape index: {0}]
  %s5 = inlined_call_operand.vmem [shape: f32[2,16,1], index: 5, kind: output, shape index: {1}]
  %6 = xla_tuple %s4, %s5
  %s7 = sld [smem:[#allocation0]]
  $region61: #{tpu_custom_call.1} parent=0
    _
  %s9 = ssub.s32 1, %s7
  %s10 = scalar_select 0, %s9, %s7
  loop: start=0, step=1, limit=4
  $region2: #{tpu_custom_call.1} parent=0 // loop_pre_header
    _
  $region3: #{tpu_custom_call.1} parent=0 // loop_header
    %s12 = sphi 0, %s16
    %p13 = scmp.ge.s32.totalorder %s12, 4
    %s19 = sphi 0, %s31
    %s20 = sphi 0, %s27
    %s21 = sphi 0, %s19
    %s22 = sphi 0, %s20
    %s23 = sphi 0, %s21
    %s24 = sphi 0, %s22
    %s36 = sphi 0, %s38
    %s39 = sphi 0, %s36
    %s40 = sphi 0, %s39
    %s56 = sphi 0, %s40
    %s60 = sphi 0, %s60
    %s62 = sphi 0, %s60
    %s63 = sphi 0, %s62
    %s77 = sphi 0, %s63
    %s81 = sphi 0, %s81
    %s83 = sphi 0, %s81
    %s84 = sphi 0, %s83
    %s98 = sphi 0, %s84
    %s102 = sphi 0, %s102
    %s104 = sphi 0, %s102
    %s105 = sphi 0, %s104
    %s119 = sphi 0, %s105
    %s125 = sphi 0, %s127
    %s128 = sphi 0, %s125
    %s129 = sphi 0, %s128
    %s145 = sphi 0, %s129
    %s151 = sphi 0, %s153
    %s154 = sphi 0, %s151
    %s155 = sphi 0, %s154
    %s171 = sphi 0, %s155
  $region4: #{tpu_custom_call.1} parent=0 // loop_header_branch
    %15 = sbr.rel (%p13) target = $region8
  $region5: #{tpu_custom_call.1} parent=0 // loop_body
    %s17 = ssub.s32 %s12, 1
    %s18 = ssub.s32 %s12, 2
    %s25 = sadd.s32 1, %s20
    %p26 = scmp.ge.s32.totalorder %s25, 1
    %s27 = scalar_select %p26, 0, %s25
    %s28 = sadd.s32 1, %s19
    %s29 = scalar_select %p26, %s28, %s19
    %p30 = scmp.ge.s32.totalorder %s29, 2
    %s31 = scalar_select %p30, 0, %s29
    %s32 = ssub.s32 %s19, %s31
    %s33 = ssub.s32 %s20, %s27
    %s34 = sor.u32 %s32, %s33
    %p35 = scmp.eq.s32.totalorder %s34, 0
    %s37 = sadd.s32 %s36, 1
    %s38 = scalar_select %p35, %s36, %s37
    %p41 = pneg %p35
    %p42 = scmp.eq.s32.totalorder %s12, 1
    %p43 = por %p41, %p42
    %p44 = scmp.ne.s32.totalorder %s36, %s39
    %p45 = scmp.eq.s32.totalorder %s12, 0
    %p46 = por %p44, %p45
    %p47 = scmp.ne.s32.totalorder %s36, %s39
    %p48 = scmp.eq.s32.totalorder %s17, 1
    %p49 = por %p47, %p48
    %p50 = scmp.ne.s32.totalorder %s39, %s40
    %p51 = scmp.eq.s32.totalorder %s17, 0
    %p52 = por %p50, %p51
    %p53 = scmp.ne.s32.totalorder %s39, %s40
    %p54 = scmp.eq.s32.totalorder %s18, 1
    %p55 = por %p53, %p54
    %p57 = scmp.ne.s32.totalorder %s40, %s56
    %p58 = scmp.eq.s32.totalorder %s18, 0
    %p59 = por %p57, %p58
    %s61 = sadd.s32 %s60, 1
    %p64 = scmp.eq.s32.totalorder %s12, 1
    %p65 = scmp.ne.s32.totalorder %s60, %s62
    %p66 = scmp.eq.s32.totalorder %s12, 0
    %p67 = por %p65, %p66
    %p68 = scmp.ne.s32.totalorder %s60, %s62
    %p69 = scmp.eq.s32.totalorder %s17, 1
    %p70 = por %p68, %p69
    %p71 = scmp.ne.s32.totalorder %s62, %s63
    %p72 = scmp.eq.s32.totalorder %s17, 0
    %p73 = por %p71, %p72
    %p74 = scmp.ne.s32.totalorder %s62, %s63
    %p75 = scmp.eq.s32.totalorder %s18, 1
    %p76 = por %p74, %p75
    %p78 = scmp.ne.s32.totalorder %s63, %s77
    %p79 = scmp.eq.s32.totalorder %s18, 0
    %p80 = por %p78, %p79
    %s82 = sadd.s32 %s81, 1
    %p85 = scmp.eq.s32.totalorder %s12, 1
    %p86 = scmp.ne.s32.totalorder %s81, %s83
    %p87 = scmp.eq.s32.totalorder %s12, 0
    %p88 = por %p86, %p87
    %p89 = scmp.ne.s32.totalorder %s81, %s83
    %p90 = scmp.eq.s32.totalorder %s17, 1
    %p91 = por %p89, %p90
    %p92 = scmp.ne.s32.totalorder %s83, %s84
    %p93 = scmp.eq.s32.totalorder %s17, 0
    %p94 = por %p92, %p93
    %p95 = scmp.ne.s32.totalorder %s83, %s84
    %p96 = scmp.eq.s32.totalorder %s18, 1
    %p97 = por %p95, %p96
    %p99 = scmp.ne.s32.totalorder %s84, %s98
    %p100 = scmp.eq.s32.totalorder %s18, 0
    %p101 = por %p99, %p100
    %s103 = sadd.s32 %s102, 1
    %p106 = scmp.eq.s32.totalorder %s12, 1
    %p107 = scmp.ne.s32.totalorder %s102, %s104
    %p108 = scmp.eq.s32.totalorder %s12, 0
    %p109 = por %p107, %p108
    %p110 = scmp.ne.s32.totalorder %s102, %s104
    %p111 = scmp.eq.s32.totalorder %s17, 1
    %p112 = por %p110, %p111
    %p113 = scmp.ne.s32.totalorder %s104, %s105
    %p114 = scmp.eq.s32.totalorder %s17, 0
    %p115 = por %p113, %p114
    %p116 = scmp.ne.s32.totalorder %s104, %s105
    %p117 = scmp.eq.s32.totalorder %s18, 1
    %p118 = por %p116, %p117
    %p120 = scmp.ne.s32.totalorder %s105, %s119
    %p121 = scmp.eq.s32.totalorder %s18, 0
    %p122 = por %p120, %p121
    %s123 = ssub.s32 %s19, %s31
    %p124 = scmp.eq.s32.totalorder %s123, 0
    %s126 = sadd.s32 %s125, 1
    %s127 = scalar_select %p124, %s125, %s126
    %p130 = pneg %p124
    %p131 = scmp.eq.s32.totalorder %s12, 1
    %p132 = por %p130, %p131
    %p133 = scmp.ne.s32.totalorder %s125, %s128
    %p134 = scmp.eq.s32.totalorder %s12, 0
    %p135 = por %p133, %p134
    %p136 = scmp.ne.s32.totalorder %s125, %s128
    %p137 = scmp.eq.s32.totalorder %s17, 1
    %p138 = por %p136, %p137
    %p139 = scmp.ne.s32.totalorder %s128, %s129
    %p140 = scmp.eq.s32.totalorder %s17, 0
    %p141 = por %p139, %p140
    %p142 = scmp.ne.s32.totalorder %s128, %s129
    %p143 = scmp.eq.s32.totalorder %s18, 1
    %p144 = por %p142, %p143
    %p146 = scmp.ne.s32.totalorder %s129, %s145
    %p147 = scmp.eq.s32.totalorder %s18, 0
    %p148 = por %p146, %p147
    %s149 = ssub.s32 %s19, %s31
    %p150 = scmp.eq.s32.totalorder %s149, 0
    %s152 = sadd.s32 %s151, 1
    %s153 = scalar_select %p150, %s151, %s152
    %p156 = pneg %p150
    %p157 = scmp.eq.s32.totalorder %s12, 1
    %p158 = por %p156, %p157
    %p159 = scmp.ne.s32.totalorder %s151, %s154
    %p160 = scmp.eq.s32.totalorder %s12, 0
    %p161 = por %p159, %p160
    %p162 = scmp.ne.s32.totalorder %s151, %s154
    %p163 = scmp.eq.s32.totalorder %s17, 1
    %p164 = por %p162, %p163
    %p165 = scmp.ne.s32.totalorder %s154, %s155
    %p166 = scmp.eq.s32.totalorder %s17, 0
    %p167 = por %p165, %p166
    %p168 = scmp.ne.s32.totalorder %s154, %s155
    %p169 = scmp.eq.s32.totalorder %s18, 1
    %p170 = por %p168, %p169
    %p172 = scmp.ne.s32.totalorder %s155, %s171
    %p173 = scmp.eq.s32.totalorder %s18, 0
    %p174 = por %p172, %p173
    %p175 = scmp.le.s32.totalorder 1, %s12
    %p176 = scmp.lt.s32.totalorder %s12, 3
    %p177 = pnand %p175, %p176
    %p178 = pneg %p177
    // Predicated region
    $region9: #{tpu_custom_call.1} parent=5 // pred_check
      _
    $region10: #{tpu_custom_call.1} parent=5 // pred_check_branch
      %180 = sbr.rel (%p177) target = $region12
    $region11: #{tpu_custom_call.1} parent=5 // pred_region
      %s181 = ssub.s32 %s12, 1
      // Predicated region
      $region13: #{tpu_custom_call.1} parent=11 // pred_check
        %p182 = pneg %p73
      $region14: #{tpu_custom_call.1} parent=11 // pred_check_branch
        %184 = sbr.rel (%p182) target = $region16
      $region15: #{tpu_custom_call.1} parent=11 // pred_region
        _
      $region16: #{tpu_custom_call.1} parent=11 // pred_fallthru
        _
      // Predicated region
      $region17: #{tpu_custom_call.1} parent=11 // pred_check
        %p185 = pneg %p94
      $region18: #{tpu_custom_call.1} parent=11 // pred_check_branch
        %187 = sbr.rel (%p185) target = $region20
      $region19: #{tpu_custom_call.1} parent=11 // pred_region
        _
      $region20: #{tpu_custom_call.1} parent=11 // pred_fallthru
        _
      // Predicated region
      $region21: #{tpu_custom_call.1} parent=11 // pred_check
        %p188 = pneg %p115
      $region22: #{tpu_custom_call.1} parent=11 // pred_check_branch
        %190 = sbr.rel (%p188) target = $region24
      $region23: #{tpu_custom_call.1} parent=11 // pred_region
        _
      $region24: #{tpu_custom_call.1} parent=11 // pred_fallthru
        _
    $region12: #{tpu_custom_call.1} parent=5 // pred_fallthru
      _
    %p191 = scmp.lt.s32.totalorder %s12, 2
    // Predicated region
    $region25: #{tpu_custom_call.1} parent=5 // pred_check
      %p192 = pneg %p191
    $region26: #{tpu_custom_call.1} parent=5 // pred_check_branch
      %194 = sbr.rel (%p192) target = $region28
    $region27: #{tpu_custom_call.1} parent=5 // pred_region
      // Predicated region
      $region29: #{tpu_custom_call.1} parent=27 // pred_check
        %p195 = pneg %p46
      $region30: #{tpu_custom_call.1} parent=27 // pred_check_branch
        %197 = sbr.rel (%p195) target = $region32
      $region31: #{tpu_custom_call.1} parent=27 // pred_region
        %s198 = smul.u32 3, %s20
        %p199 = scmp.lt.s32.totalorder %s19, 1
        %s200 = scalar_select %p199, %s19, 1
        %p201 = scmp.lt.s32.totalorder %s198, 2
        %s202 = scalar_select %p201, %s198, 2
        %s203 = smul.addr %s200, 3
        %s204 = sadd.s32 %s202, %s203
        %s205 = smul.addr %s204, 2
        %s206 = scalar_lea.vmem %s0, %s205
        %s207 = smul.u32 3, %s20
      $region32: #{tpu_custom_call.1} parent=27 // pred_fallthru
        _
    $region28: #{tpu_custom_call.1} parent=5 // pred_fallthru
      _
    %p208 = scmp.le.s32.totalorder 1, %s12
    %p209 = scmp.lt.s32.totalorder %s12, 3
    %p210 = pnand %p208, %p209
    %p211 = pneg %p210
    // Predicated region
    $region33: #{tpu_custom_call.1} parent=5 // pred_check
      _
    $region34: #{tpu_custom_call.1} parent=5 // pred_check_branch
      %213 = sbr.rel (%p210) target = $region36
    $region35: #{tpu_custom_call.1} parent=5 // pred_region
      %s214 = ssub.s32 %s12, 1
      %s215 = smul.u32 3, %s22
      %p216 = scmp.lt.s32.totalorder %s21, 1
      %s217 = scalar_select %p216, %s21, 1
      %p218 = scmp.lt.s32.totalorder %s215, 2
      %s219 = scalar_select %p218, %s215, 2
      %s220 = smul.addr %s217, 3
      %s221 = sadd.s32 %s219, %s220
      %s222 = smul.addr %s221, 2
      %s223 = scalar_lea.vmem %s0, %s222
      %p224 = pneg %p52
      %p225 = pneg %p49
      %p226 = pneg %p73
      %p227 = pneg %p70
      %p228 = pneg %p94
      %p229 = pneg %p91
      %p230 = pneg %p115
      %p231 = pneg %p112
      %p232 = pneg %p141
      %p233 = pneg %p138
      %p234 = scmp.lt.s32.totalorder %s21, 1
      %s235 = scalar_select %p234, %s21, 1
      %s236 = smul.addr %s235, 2
      %s237 = smul.addr %s236, 8
      %s238 = scalar_lea.vmem %s4, %s237
      %p239 = pneg %p167
      %p240 = pneg %p164
      %p241 = scmp.lt.s32.totalorder %s21, 1
      %s242 = scalar_select %p241, %s21, 1
      %s243 = smul.addr %s242, 2
      %s244 = smul.addr %s243, 8
      %s245 = scalar_lea.vmem %s5, %s244
      %s246 = smul.u32 3, %s22
      %p247 = scmp.lt.s32.totalorder %s21, 1
      %s248 = scalar_select %p247, %s21, 1
      %p249 = scmp.lt.s32.totalorder %s246, 2
      %s250 = scalar_select %p249, %s246, 2
      %s251 = smul.addr %s248, 3
      %s252 = sadd.s32 %s250, %s251
      %s253 = smul.addr %s252, 2
      %s254 = scalar_lea.vmem %s0, %s253
      %s255 = smul.u32 3, %s22
      %p256 = scmp.lt.s32.totalorder %s21, 1
      %s257 = scalar_select %p256, %s21, 1
      %s258 = smul.addr %s257, 2
      %s259 = smul.addr %s258, 8
      %s260 = scalar_lea.vmem %s4, %s259
      %p261 = scmp.lt.s32.totalorder %s21, 1
      %s262 = scalar_select %p261, %s21, 1
      %s263 = smul.addr %s262, 2
      %s264 = smul.addr %s263, 8
      %s265 = scalar_lea.vmem %s5, %s264
      %p267 = scmp.eq.s32.totalorder %s22, 0
      // Predicated region
      $region37: #{tpu_custom_call.1} parent=35 // pred_check
        %p268 = pneg %p267
      $region38: #{tpu_custom_call.1} parent=35 // pred_check_branch
        %270 = sbr.rel (%p268) target = $region40
      $region39: #{tpu_custom_call.1} parent=35 // pred_region
        %vm271 = vcmask 7168
        %272 = vst.msk [vmem:[%s260] sm:$0xff] %vm271, 0.0
        %273 = vst.msk [vmem:[%s260 + $0x8] sm:$0xff] %vm271, 0.0
        %274 = vst.msk [vmem:[%s265] sm:$0xff] %vm271, 0.0
        %275 = vst.msk [vmem:[%s265 + $0x8] sm:$0xff] %vm271, 0.0
      $region40: #{tpu_custom_call.1} parent=35 // pred_fallthru
        _
      %v276 = vld [vmem:[%s254] sm:$0x3f]
      %v277 = vld [vmem:[%s1] sm:$0xf]
      %v278 = vld [vmem:[%s2] sm:$0xff]
      %280 = vset.pattern.permute.xlu0 0
      %281 = vperm.xlu0 %280, %v278
      %v282 = vpop.permute.xlu0 %281
      %v285 = vcombine.high %v276, %v276
      %v287 = vunpack.c.l.s4 1983009808
      %v288 = vunpack.c.0.s8 %v287
      %v289 = vlaneseq
      %v290 = vshrl.u32 %v289, 7
      %v291 = vsub.s32 %v288, %v290
      %v292 = vrot.slane %v276, %v291
      %v294 = vunpack.c.l.s4 1983009808
      %v295 = vunpack.c.0.s8 %v294
      %v296 = vlaneseq
      %v297 = vshrl.u32 %v296, 7
      %v298 = vsub.s32 %v295, %v297
      %v299 = vrot.slane %v285, %v298
      %v300 = vcombine.high %v292, %v292
      %vm301 = vcmask 31744
      %v303 = vsel %vm301, %v277, 0
      %vm305 = vcmask 1041408
      %v307 = vsel %vm305, %v292, 0
      %v310 = vsel %vm305, %v300, 0
      %v313 = vsel %vm305, %v299, 0
      %315 = vmatprep.subr.bf16.mxu0 0
      %316 = vmatpush1.bf16.msra.mxu0 0
      %317 = vmatprep.subr.bf16.mxu0 0
      %318 = vmatpush1.bf16.msra.mxu0 0
      %319 = vmatprep.subr.bf16.mxu0 0
      %320 = vmatpush1.bf16.msra.mxu0 0
      %321 = vmatprep.subr.bf16.mxu0 0
      %322 = vmatpush1.bf16.msra.mxu0 0
      %323 = vmatprep.subr.bf16.mxu0 0
      %324 = vmatpush1.bf16.msra.mxu0 0
      %325 = vmatprep.subr.bf16.mxu0 0
      %326 = vmatpush1.bf16.msra.mxu0 0
      %327 = vmatprep.subr.bf16.mxu0 0
      %328 = vmatpush1.bf16.msra.mxu0 0
      %329 = vmatprep.subr.bf16.mxu0 %v310
      %330 = vmatpush1.bf16.msra.mxu0 %v307
      %331 = vmatprep.subr.bf16.mxu0 0
      %332 = vmatpush2.bf16.msra.mxu0 0
      %333 = vmatprep.subr.bf16.mxu0 0
      %334 = vmatpush2.bf16.msra.mxu0 0
      %335 = vmatprep.subr.bf16.mxu0 0
      %336 = vmatpush2.bf16.msra.mxu0 0
      %337 = vmatprep.subr.bf16.mxu0 0
      %338 = vmatpush2.bf16.msra.mxu0 0
      %339 = vmatprep.subr.bf16.mxu0 0
      %340 = vmatpush2.bf16.msra.mxu0 0
      %341 = vmatprep.subr.bf16.mxu0 0
      %342 = vmatpush2.bf16.msra.mxu0 0
      %343 = vmatprep.subr.bf16.mxu0 0
      %344 = vmatpush2.bf16.msra.mxu0 0
      %345 = vmatprep.subr.bf16.mxu0 0
      %346 = vmatpush2.bf16.msra.mxu0 0
      %347 = vmatprep.mubr.bf16.mxu0 0
      %348 = vmatmul.mubr.bf16.gmra.mxu0 %v303
      %v349 = vpop.f32.mrf.mxu0
      %v350 = vadd.f32 %v282, %v349
      %v351 = vpop.f32.mrf.mxu0
      %v352 = vadd.f32 %v282, %v351
      %v353 = vpop.f32.mrf.mxu0
      %v354 = vpop.f32.mrf.mxu0
      %355 = vdwg.mxu0
      %356 = vmatprep.subr.bf16.mxu0 0
      %357 = vmatpush1.bf16.msra.mxu0 0
      %358 = vmatprep.subr.bf16.mxu0 0
      %359 = vmatpush1.bf16.msra.mxu0 0
      %360 = vmatprep.subr.bf16.mxu0 0
      %361 = vmatpush1.bf16.msra.mxu0 0
      %362 = vmatprep.subr.bf16.mxu0 0
      %363 = vmatpush1.bf16.msra.mxu0 0
      %364 = vmatprep.subr.bf16.mxu0 0
      %365 = vmatpush1.bf16.msra.mxu0 0
      %366 = vmatprep.subr.bf16.mxu0 0
      %367 = vmatpush1.bf16.msra.mxu0 0
      %368 = vmatprep.subr.bf16.mxu0 0
      %369 = vmatpush1.bf16.msra.mxu0 0
      %370 = vmatprep.subr.bf16.mxu0 0
      %371 = vmatpush1.bf16.msra.mxu0 %v313
      %372 = vmatprep.subr.bf16.mxu0 0
      %373 = vmatpush2.bf16.msra.mxu0 0
      %374 = vmatprep.subr.bf16.mxu0 0
      %375 = vmatpush2.bf16.msra.mxu0 0
      %376 = vmatprep.subr.bf16.mxu0 0
      %377 = vmatpush2.bf16.msra.mxu0 0
      %378 = vmatprep.subr.bf16.mxu0 0
      %379 = vmatpush2.bf16.msra.mxu0 0
      %380 = vmatprep.subr.bf16.mxu0 0
      %381 = vmatpush2.bf16.msra.mxu0 0
      %382 = vmatprep.subr.bf16.mxu0 0
      %383 = vmatpush2.bf16.msra.mxu0 0
      %384 = vmatprep.subr.bf16.mxu0 0
      %385 = vmatpush2.bf16.msra.mxu0 0
      %386 = vmatprep.subr.bf16.mxu0 0
      %387 = vmatpush2.bf16.msra.mxu0 0
      %388 = vmatprep.mubr.bf16.mxu0 0
      %389 = vmatmul.mubr.bf16.gmra.mxu0 %v303
      %v390 = vpop.f32.mrf.mxu0
      %v391 = vadd.f32 %v282, %v390
      %v392 = vpop.f32.mrf.mxu0
      %v393 = vpop.f32.mrf.mxu0
      %v394 = vpop.f32.mrf.mxu0
      %395 = vdwg.mxu0
      %v396 = vmul.f32 %v350, 0.2
      %v397 = vmul.f32 %v352, 0.2
      %v398 = vmul.f32 %v391, 0.2
      %v399 = vmax.f32 %v350, %v396
      %v400 = vmax.f32 %v352, %v397
      %v401 = vmax.f32 %v391, %v398
      %v402 = vld [vmem:[%s3] sm:$0xf]
      %v403 = vld [vmem:[%s3 + $0x4] sm:$0xf]
      %v404 = vpack.c.bf16 %v399, %v399
      %v405 = vpack.c.bf16 %v400, %v400
      %v406 = vpack.c.bf16 %v401, %v401
      %v409 = vunpack.c.l.b16 %v402
      %v410 = vunpack.c.l.b16 %v403
      %v411 = vpack.c.b16 %v410, %v409
      %vm412 = vcmask 64512
      %v414 = vsel %vm412, %v411, 0
      %vm416 = vcmask 1043456
      %v418 = vsel %vm416, %v404, 0
      %v421 = vsel %vm416, %v405, 0
      %v424 = vsel %vm416, %v406, 0
      %426 = vmatprep.subr.bf16.mxu0 0
      %427 = vmatpush1.bf16.msra.mxu0 0
      %428 = vmatprep.subr.bf16.mxu0 0
      %429 = vmatpush1.bf16.msra.mxu0 0
      %430 = vmatprep.subr.bf16.mxu0 0
      %431 = vmatpush1.bf16.msra.mxu0 0
      %432 = vmatprep.subr.bf16.mxu0 0
      %433 = vmatpush1.bf16.msra.mxu0 0
      %434 = vmatprep.subr.bf16.mxu0 0
      %435 = vmatpush1.bf16.msra.mxu0 0
      %436 = vmatprep.subr.bf16.mxu0 0
      %437 = vmatpush1.bf16.msra.mxu0 0
      %438 = vmatprep.subr.bf16.mxu0 0
      %439 = vmatpush1.bf16.msra.mxu0 0
      %440 = vmatprep.subr.bf16.mxu0 %v421
      %441 = vmatpush1.bf16.msra.mxu0 %v418
      %442 = vmatprep.subr.bf16.mxu0 0
      %443 = vmatpush2.bf16.msra.mxu0 0
      %444 = vmatprep.subr.bf16.mxu0 0
      %445 = vmatpush2.bf16.msra.mxu0 0
      %446 = vmatprep.subr.bf16.mxu0 0
      %447 = vmatpush2.bf16.msra.mxu0 0
      %448 = vmatprep.subr.bf16.mxu0 0
      %449 = vmatpush2.bf16.msra.mxu0 0
      %450 = vmatprep.subr.bf16.mxu0 0
      %451 = vmatpush2.bf16.msra.mxu0 0
      %452 = vmatprep.subr.bf16.mxu0 0
      %453 = vmatpush2.bf16.msra.mxu0 0
      %454 = vmatprep.subr.bf16.mxu0 0
      %455 = vmatpush2.bf16.msra.mxu0 0
      %456 = vmatprep.subr.bf16.mxu0 0
      %457 = vmatpush2.bf16.msra.mxu0 0
      %458 = vmatprep.mubr.bf16.mxu0 0
      %459 = vmatmul.mubr.bf16.gmra.mxu0 %v414
      %v460 = vpop.f32.mrf.mxu0
      %v461 = vadd.f32 0.0, %v460
      %v462 = vpop.f32.mrf.mxu0
      %v463 = vadd.f32 0.0, %v462
      %v464 = vpop.f32.mrf.mxu0
      %v465 = vadd.f32 0.0, %v464
      %v466 = vpop.f32.mrf.mxu0
      %v467 = vadd.f32 0.0, %v466
      %468 = vdwg.mxu0
      %469 = vmatprep.subr.bf16.mxu0 0
      %470 = vmatpush1.bf16.msra.mxu0 0
      %471 = vmatprep.subr.bf16.mxu0 0
      %472 = vmatpush1.bf16.msra.mxu0 0
      %473 = vmatprep.subr.bf16.mxu0 0
      %474 = vmatpush1.bf16.msra.mxu0 0
      %475 = vmatprep.subr.bf16.mxu0 0
      %476 = vmatpush1.bf16.msra.mxu0 0
      %477 = vmatprep.subr.bf16.mxu0 0
      %478 = vmatpush1.bf16.msra.mxu0 0
      %479 = vmatprep.subr.bf16.mxu0 0
      %480 = vmatpush1.bf16.msra.mxu0 0
      %481 = vmatprep.subr.bf16.mxu0 0
      %482 = vmatpush1.bf16.msra.mxu0 0
      %483 = vmatprep.subr.bf16.mxu0 0
      %484 = vmatpush1.bf16.msra.mxu0 %v424
      %485 = vmatprep.subr.bf16.mxu0 0
      %486 = vmatpush2.bf16.msra.mxu0 0
      %487 = vmatprep.subr.bf16.mxu0 0
      %488 = vmatpush2.bf16.msra.mxu0 0
      %489 = vmatprep.subr.bf16.mxu0 0
      %490 = vmatpush2.bf16.msra.mxu0 0
      %491 = vmatprep.subr.bf16.mxu0 0
      %492 = vmatpush2.bf16.msra.mxu0 0
      %493 = vmatprep.subr.bf16.mxu0 0
      %494 = vmatpush2.bf16.msra.mxu0 0
      %495 = vmatprep.subr.bf16.mxu0 0
      %496 = vmatpush2.bf16.msra.mxu0 0
      %497 = vmatprep.subr.bf16.mxu0 0
      %498 = vmatpush2.bf16.msra.mxu0 0
      %499 = vmatprep.subr.bf16.mxu0 0
      %500 = vmatpush2.bf16.msra.mxu0 0
      %501 = vmatprep.mubr.bf16.mxu0 0
      %502 = vmatmul.mubr.bf16.gmra.mxu0 %v414
      %v503 = vpop.f32.mrf.mxu0
      %v504 = vadd.f32 0.0, %v503
      %v505 = vpop.f32.mrf.mxu0
      %v506 = vpop.f32.mrf.mxu0
      %v507 = vadd.f32 0.0, %v506
      %v508 = vpop.f32.mrf.mxu0
      %509 = vdwg.mxu0
      %v510 = vld [vmem:[%s260] sm:$0xff]
      %v511 = vld [vmem:[%s260 + $0x8] sm:$0xff]
      %v512 = vadd.f32 %v461, %v463
      %v513 = vadd.f32 %v512, %v504
      %514 = vadd.xlane.f32.xlu0 %v513
      %v515 = vpop.xlane.xlu0 %514
      %v516 = vadd.f32 %v465, %v467
      %v517 = vadd.f32 %v516, %v507
      %518 = vadd.xlane.f32.xlu0 %v517
      %v519 = vpop.xlane.xlu0 %518
      %v520 = vadd.f32 %v510, %v515
      %v521 = vadd.f32 %v511, %v519
      %vm522 = vcmask 7168
      %523 = vst.msk [vmem:[%s260] sm:$0xff] %vm522, %v520
      %524 = vst.msk [vmem:[%s260 + $0x8] sm:$0xff] %vm522, %v521
      %v525 = vld [vmem:[%s265] sm:$0xff]
      %v526 = vld [vmem:[%s265 + $0x8] sm:$0xff]
      %v527 = vmul.f32 %v461, %v461
      %v528 = vmul.f32 %v463, %v463
      %v529 = vmul.f32 %v504, %v504
      %v530 = vmul.f32 %v465, %v465
      %v531 = vmul.f32 %v467, %v467
      %v532 = vmul.f32 %v507, %v507
      %v533 = vadd.f32 %v527, %v528
      %v534 = vadd.f32 %v533, %v529
      %535 = vadd.xlane.f32.xlu0 %v534
      %v536 = vpop.xlane.xlu0 %535
      %v537 = vadd.f32 %v530, %v531
      %v538 = vadd.f32 %v537, %v532
      %539 = vadd.xlane.f32.xlu0 %v538
      %v540 = vpop.xlane.xlu0 %539
      %v541 = vadd.f32 %v525, %v536
      %v542 = vadd.f32 %v526, %v540
      %543 = vst.msk [vmem:[%s265] sm:$0xff] %vm522, %v541
      %544 = vst.msk [vmem:[%s265 + $0x8] sm:$0xff] %vm522, %v542
      %p545 = scmp.lt.s32.totalorder %s21, 1
      %s546 = scalar_select %p545, %s21, 1
      %s547 = smul.addr %s546, 2
      %s548 = smul.addr %s547, 8
      %s549 = scalar_lea.vmem %s4, %s548
      %p550 = scmp.lt.s32.totalorder %s21, 1
      %s551 = scalar_select %p550, %s21, 1
      %s552 = smul.addr %s551, 2
      %s553 = smul.addr %s552, 8
      %s554 = scalar_lea.vmem %s5, %s553
      // Predicated region
      $region41: #{tpu_custom_call.1} parent=35 // pred_check
        %p555 = pneg %p138
      $region42: #{tpu_custom_call.1} parent=35 // pred_check_branch
        %557 = sbr.rel (%p555) target = $region44
      $region43: #{tpu_custom_call.1} parent=35 // pred_region
        _
      $region44: #{tpu_custom_call.1} parent=35 // pred_fallthru
        _
      // Predicated region
      $region45: #{tpu_custom_call.1} parent=35 // pred_check
        %p558 = pneg %p164
      $region46: #{tpu_custom_call.1} parent=35 // pred_check_branch
        %560 = sbr.rel (%p558) target = $region48
      $region47: #{tpu_custom_call.1} parent=35 // pred_region
        _
      $region48: #{tpu_custom_call.1} parent=35 // pred_fallthru
        _
    $region36: #{tpu_custom_call.1} parent=5 // pred_fallthru
      _
    %p561 = scmp.le.s32.totalorder 2, %s12
    // Predicated region
    $region49: #{tpu_custom_call.1} parent=5 // pred_check
      %p562 = pneg %p561
    $region50: #{tpu_custom_call.1} parent=5 // pred_check_branch
      %564 = sbr.rel (%p562) target = $region52
    $region51: #{tpu_custom_call.1} parent=5 // pred_region
      %s565 = ssub.s32 %s12, 2
      // Predicated region
      $region53: #{tpu_custom_call.1} parent=51 // pred_check
        %p566 = pneg %p144
      $region54: #{tpu_custom_call.1} parent=51 // pred_check_branch
        %568 = sbr.rel (%p566) target = $region56
      $region55: #{tpu_custom_call.1} parent=51 // pred_region
        %p569 = scmp.lt.s32.totalorder %s23, 1
        %s570 = scalar_select %p569, %s23, 1
        %s571 = smul.addr %s570, 2
        %s572 = smul.addr %s571, 8
        %s573 = scalar_lea.vmem %s4, %s572
      $region56: #{tpu_custom_call.1} parent=51 // pred_fallthru
        _
      // Predicated region
      $region57: #{tpu_custom_call.1} parent=51 // pred_check
        %p574 = pneg %p170
      $region58: #{tpu_custom_call.1} parent=51 // pred_check_branch
        %576 = sbr.rel (%p574) target = $region60
      $region59: #{tpu_custom_call.1} parent=51 // pred_region
        %p577 = scmp.lt.s32.totalorder %s23, 1
        %s578 = scalar_select %p577, %s23, 1
        %s579 = smul.addr %s578, 2
        %s580 = smul.addr %s579, 8
        %s581 = scalar_lea.vmem %s5, %s580
      $region60: #{tpu_custom_call.1} parent=51 // pred_fallthru
        _
    $region52: #{tpu_custom_call.1} parent=5 // pred_fallthru
      _
  $region6: #{tpu_custom_call.1} parent=0 // loop_footer
    %s16 = sadd.s32 1, %s12
  $region7: #{tpu_custom_call.1} parent=0 // loop_footer_branch
    %11 = sbr.rel target = $region3
  $region8: #{tpu_custom_call.1} parent=0 // loop_exit
    _

</llo_original>
